<compile_context>
chip_gen: v6e
topology: v6e:2x2x1
jax: 0.10.0
libtpu: 0.0.40
codegen_flags: <defaults>
</compile_context>

<pallas_src>
import functools
import math

import jax
import jax.numpy as jnp
from jax.experimental import pallas as pl
from jax.experimental.pallas import tpu as pltpu


def _round_up(x, m):
    return ((x + m - 1) // m) * m


def _cdiv(a, b):
    return (a + b - 1) // b


# ---------------------------------------------------------------------------
# Pallas kernel: one (tm, 9C) x (9C, Coutp) MXU dot per tile + LayerNorm.
# ---------------------------------------------------------------------------
def _conv_ln_kernel(p_ref, w_ref, g_ref, b_ref, o_ref, *, cout, cpad, eps):
    """p_ref : (1, tm, 9C)     bf16 K-packed conv patches for this tile
       w_ref : (9C, Coutp)     bf16 packed conv weight (Cout zero-padded)
       g_ref : (1, Coutp)      f32  LN gamma (zero-padded)
       b_ref : (1, Coutp)      f32  LN beta  (zero-padded)
       o_ref : (1, tm, Coutp)  output tile (Coutp % 128 == 0 -> lane-dense)
    """
    # Single flattened matmul per tile: M = th*Wo (hundreds), K = 9C.
    y = jnp.dot(p_ref[0], w_ref[...], preferred_element_type=jnp.float32)

    # LayerNorm over the true `cout` channels.  Padded weight columns are
    # exactly zero, so channel sums over Coutp equal sums over cout; padded
    # channels of `d` equal -mean, and their exact contribution to sum(d*d)
    # is subtracted (cpad == 0 for real InternImage channel counts).
    inv_cout = 1.0 / float(cout)
    mean = jnp.sum(y, axis=-1, keepdims=True) * inv_cout
    d = y - mean
    ss = jnp.sum(d * d, axis=-1, keepdims=True)
    if cpad:
        ss = ss - float(cpad) * (mean * mean)
    var = jnp.maximum(ss * inv_cout, 0.0)
    yhat = d * jax.lax.rsqrt(var + eps)
    # gamma/beta broadcast once over the whole tile; padded gamma/beta lanes
    # are zero, so padded output channels are exactly zero (sliced off later).
    o_ref[0] = (yhat * g_ref[...] + b_ref[...]).astype(o_ref.dtype)


# ---------------------------------------------------------------------------
# Generation-aware sizing helpers.
# ---------------------------------------------------------------------------
def _vmem_budget_bytes():
    """~70% of physical VMEM (64 MiB on v7x, 128 MiB on v5e/v6e)."""
    try:
        cap = getattr(pltpu.get_tpu_info(), "vmem_capacity_bytes", None)
        if cap:
            return int(cap * 0.7)
    except Exception:
        pass
    return int(64 * 1024 * 1024 * 0.7)      # conservative (v7x-sized) fallback


def _vmem_estimate(tm, c9, coutp, in_b, out_b, weight_buffers):
    """Per-grid-step VMEM estimate (pipeline buffers + kernel temporaries)."""
    patches = 2 * tm * _round_up(c9, 128) * in_b        # double-buffered input
    weight = weight_buffers * _round_up(c9, 8) * coutp * in_b
    params = 2 * 2 * coutp * 4                          # gamma / beta
    outb = 2 * tm * coutp * out_b                       # double-buffered output
    work = 3 * tm * coutp * 4                           # f32 dot result + LN temps
    return patches + weight + params + outb + work + (2 << 20)


def _pick_tile_rows(ho, wo, c9, coutp, in_b, out_b, weight_buffers, budget):
    """Rows per tile: tm = th*wo kept a multiple of 8, sized to the budget."""
    t_unit = 8 // math.gcd(wo, 8)       # smallest th giving (th*wo) % 8 == 0
    target_m = 1024 if budget > 60 * (1 << 20) else 512
    th = t_unit * max(1, target_m // (wo * t_unit))
    th = min(th, t_unit * _cdiv(ho, t_unit))   # at most one tile worth of pad rows
    while th > t_unit and _vmem_estimate(th * wo, c9, coutp, in_b, out_b,
                                         weight_buffers) > 0.85 * budget:
        th -= t_unit
    # TODO(synk): for extremely wide rows that still exceed the budget at
    # th == t_unit, additionally tile Wo / the K dimension.
    return th


def _resident_spec(block_shape, index_map, single_buffer):
    """BlockSpec for grid-invariant operands; single-buffered when large."""
    if single_buffer:
        try:
            return pl.BlockSpec(block_shape, index_map,
                                pipeline_mode=pl.Buffered(buffer_count=1))
        except Exception:   # older JAX without pipeline_mode support
            pass
    return pl.BlockSpec(block_shape, index_map)


# ---------------------------------------------------------------------------
# Wrapper.
# ---------------------------------------------------------------------------
def downsample_layer(x, conv_w, ln_gamma, ln_beta, *, eps=1e-6,
                     compute_dtype=jnp.bfloat16):
    """InternImage DownsampleLayer forward (Conv2d k3 s2 p1 bias-free + LN).

    x        : (N, H, W, C)   channels_last
    conv_w   : (2C, C, 3, 3)  PyTorch Conv2d weight (OIHW)
    ln_gamma, ln_beta : (2C,)
    returns  : (N, Ho, Wo, 2C) channels_last
    """
    n, h, w, c = x.shape
    cout = 2 * c
    assert conv_w.shape == (cout, c, 3, 3), conv_w.shape
    ho = (h - 1) // 2 + 1
    wo = (w - 1) // 2 + 1
    # Padded-input bounds used by the tap slices below (k=3, s=2, p=1).
    assert 2 * ho <= h + 1 and 2 * wo <= w + 1
    c9 = 9 * c
    coutp = _round_up(cout, 128)            # lane-dense output channels
    cpad = coutp - cout
    out_dtype = x.dtype                     # TODO(synk): bf16 output if downstream allows

    in_b = jnp.dtype(compute_dtype).itemsize
    out_b = jnp.dtype(out_dtype).itemsize
    weight_bytes = _round_up(c9, 8) * coutp * in_b
    single_buffer_weight = weight_bytes >= (1 << 20)
    weight_buffers = 1 if single_buffer_weight else 2

    budget = _vmem_budget_bytes()
    th = _pick_tile_rows(ho, wo, c9, coutp, in_b, out_b, weight_buffers, budget)
    ho_p = _cdiv(ho, th) * th               # Ho need not divide the row tile
    tm = th * wo
    est = _vmem_estimate(tm, c9, coutp, in_b, out_b, weight_buffers)
    vmem_limit = int(min(budget, max(est * 1.3, 32 * 1024 * 1024)))

    # K-packed patch tensor (N, Ho_p*Wo, 9C): one fused pad + 9 strided slices
    # + channel concat.  Channel order is (kh, kw, cin), matching the weight.
    xp = jnp.pad(x.astype(compute_dtype), ((0, 0), (1, 1), (1, 1), (0, 0)))
    slabs = [xp[:, kh:kh + 2 * ho:2, kw:kw + 2 * wo:2, :]
             for kh in range(3) for kw in range(3)]
    patches = jnp.concatenate(slabs, axis=-1)            # (n, ho, wo, 9c)
    if ho_p != ho:
        patches = jnp.pad(patches, ((0, 0), (0, ho_p - ho), (0, 0), (0, 0)))
    patches = patches.reshape(n, ho_p * wo, c9)

    # Conv weight OIHW -> (kh, kw, Cin, Cout) -> (9C, Cout); zero-pad Cout so
    # stores are lane-dense and channel sums are unchanged.
    w_k = jnp.transpose(conv_w, (2, 3, 1, 0)).reshape(c9, cout)
    w_k = jnp.pad(w_k, ((0, 0), (0, cpad))).astype(compute_dtype)
    gamma = jnp.pad(ln_gamma.astype(jnp.float32), (0, cpad)).reshape(1, coutp)
    beta = jnp.pad(ln_beta.astype(jnp.float32), (0, cpad)).reshape(1, coutp)

    grid = (n, ho_p // th)
    cost = pl.CostEstimate(
        flops=2 * n * ho_p * wo * c9 * coutp,
        transcendentals=n * ho_p * wo,
        bytes_accessed=(patches.size * in_b + w_k.size * in_b
                        + 2 * coutp * 4 + n * ho_p * wo * coutp * out_b))

    out = pl.pallas_call(
        functools.partial(_conv_ln_kernel, cout=cout, cpad=cpad, eps=eps),
        out_shape=jax.ShapeDtypeStruct((n, ho_p * wo, coutp), out_dtype),
        grid=grid,
        in_specs=[
            pl.BlockSpec((1, tm, c9), lambda bn, i: (bn, i, 0)),
            _resident_spec((c9, coutp), lambda bn, i: (0, 0),
                           single_buffer_weight),
            _resident_spec((1, coutp), lambda bn, i: (0, 0),
                           single_buffer_weight),
            _resident_spec((1, coutp), lambda bn, i: (0, 0),
                           single_buffer_weight),
        ],
        out_specs=pl.BlockSpec((1, tm, coutp), lambda bn, i: (bn, i, 0)),
        compiler_params=pltpu.CompilerParams(
            dimension_semantics=("parallel", "parallel"),
            vmem_limit_bytes=vmem_limit),
        cost_estimate=cost,
    )(patches, w_k, gamma, beta)

    # Un-flatten rows and drop the Ho / channel padding.
    out = out.reshape(n, ho_p, wo, coutp)
    return out[:, :ho, :, :cout]


# ---------------------------------------------------------------------------
# Pure-JAX reference (bf16-rounded inputs to match the kernel's MXU precision)
# ---------------------------------------------------------------------------
def _reference(x, conv_w, ln_gamma, ln_beta, eps=1e-6, compute_dtype=jnp.bfloat16):
    xr = x.astype(compute_dtype).astype(jnp.float32)
    wr = conv_w.astype(compute_dtype).astype(jnp.float32)
    y = jax.lax.conv_general_dilated(
        jnp.transpose(xr, (0, 3, 1, 2)), wr, window_strides=(2, 2),
        padding=((1, 1), (1, 1)),
        dimension_numbers=("NCHW", "OIHW", "NCHW"),
        precision=jax.lax.Precision.HIGHEST)
    y = jnp.transpose(y, (0, 2, 3, 1))                   # channels_last
    mean = jnp.mean(y, axis=-1, keepdims=True)
    var = jnp.mean((y - mean) ** 2, axis=-1, keepdims=True)
    return (y - mean) * jax.lax.rsqrt(var + eps) * ln_gamma + ln_beta


if __name__ == "__main__":
    key = jax.random.PRNGKey(0)
    k_x, k_w, k_g, k_b = jax.random.split(key, 4)

    N, H, W, C = 2, 16, 16, 4            # output (2, 8, 8, 8)
    x = jax.random.normal(k_x, (N, H, W, C), dtype=jnp.float32)
    conv_w = jax.random.normal(k_w, (2 * C, C, 3, 3), dtype=jnp.float32) * 0.1
    ln_gamma = 1.0 + 0.1 * jax.random.normal(k_g, (2 * C,), dtype=jnp.float32)
    ln_beta = 0.1 * jax.random.normal(k_b, (2 * C,), dtype=jnp.float32)

    fwd = jax.jit(downsample_layer)
    out = jax.block_until_ready(fwd(x, conv_w, ln_gamma, ln_beta))

    ref = _reference(x, conv_w, ln_gamma, ln_beta)
    assert out.shape == (N, H // 2, W // 2, 2 * C), out.shape
    max_err = float(jnp.max(jnp.abs(out - ref)))
    assert jnp.allclose(out, ref, atol=3e-3, rtol=3e-3), max_err

    print("KERNEL_OK")
</pallas_src>

<mosaic_0001>
module attributes {stable_mosaic.version = 11 : i64} {
  func.func @_conv_ln_kernel(%arg0: i32, %arg1: i32, %arg2: memref<1x64x36xbf16, #tpu.memory_space<vmem>>, %arg3: memref<36x128xbf16, #tpu.memory_space<vmem>>, %arg4: memref<1x128xf32, #tpu.memory_space<vmem>>, %arg5: memref<1x128xf32, #tpu.memory_space<vmem>>, %arg6: memref<1x64x128xf32, #tpu.memory_space<vmem>>) attributes {dimension_semantics = [#tpu.dimension_semantics<parallel>, #tpu.dimension_semantics<parallel>], iteration_bounds = array<i64: 2, 1>, scalar_prefetch = 0 : i64, scratch_operands = 0 : i64, tpu.core_type = #tpu.core_type<tc>, window_params = [{transform_indices = @transform_0, window_bounds = array<i64: 1, 64, 36>}, {pipeline_mode = #tpu.pipeline_mode<synchronous>, transform_indices = @transform_1, window_bounds = array<i64: 36, 128>}, {pipeline_mode = #tpu.pipeline_mode<synchronous>, transform_indices = @transform_2, window_bounds = array<i64: 1, 128>}, {pipeline_mode = #tpu.pipeline_mode<synchronous>, transform_indices = @transform_3, window_bounds = array<i64: 1, 128>}, {transform_indices = @transform_4, window_bounds = array<i64: 1, 64, 128>}]} {
    %c0 = arith.constant 0 : index
    %c0_0 = arith.constant 0 : index
    %c0_1 = arith.constant 0 : index
    %0 = vector.load %arg2[%c0, %c0_0, %c0_1] : memref<1x64x36xbf16, #tpu.memory_space<vmem>>, vector<1x64x36xbf16>
    %1 = vector.shape_cast %0 : vector<1x64x36xbf16> to vector<64x36xbf16>
    %c0_2 = arith.constant 0 : index
    %c0_3 = arith.constant 0 : index
    %2 = vector.load %arg3[%c0_2, %c0_3] : memref<36x128xbf16, #tpu.memory_space<vmem>>, vector<36x128xbf16>
    %cst = arith.constant dense<0.000000e+00> : vector<64x128xf32>
    %3 = tpu.matmul %1, %2, %cst {dimension_numbers = #tpu.dot_dimension_numbers<[1], [0], [0], [1], [0, 0, 1, 1], [], []>} : vector<64x36xbf16>, vector<36x128xbf16>, vector<64x128xf32> -> vector<64x128xf32>
    %cst_4 = arith.constant dense<0.000000e+00> : vector<64xf32>
    %4 = vector.multi_reduction <add>, %3, %cst_4 [1] : vector<64x128xf32> to vector<64xf32>
    %5 = vector.shape_cast %4 : vector<64xf32> to vector<64x1xf32>
    %cst_5 = arith.constant 1.250000e-01 : f32
    %6 = vector.broadcast %cst_5 : f32 to vector<64x1xf32>
    %7 = arith.mulf %5, %6 : vector<64x1xf32>
    %8 = vector.broadcast %7 : vector<64x1xf32> to vector<64x128xf32>
    %9 = arith.subf %3, %8 : vector<64x128xf32>
    %10 = arith.mulf %9, %9 : vector<64x128xf32>
    %cst_6 = arith.constant dense<0.000000e+00> : vector<64xf32>
    %11 = vector.multi_reduction <add>, %10, %cst_6 [1] : vector<64x128xf32> to vector<64xf32>
    %12 = vector.shape_cast %11 : vector<64xf32> to vector<64x1xf32>
    %13 = arith.mulf %7, %7 : vector<64x1xf32>
    %cst_7 = arith.constant 1.200000e+02 : f32
    %14 = vector.broadcast %cst_7 : f32 to vector<64x1xf32>
    %15 = arith.mulf %14, %13 : vector<64x1xf32>
    %16 = arith.subf %12, %15 : vector<64x1xf32>
    %cst_8 = arith.constant 1.250000e-01 : f32
    %17 = vector.broadcast %cst_8 : f32 to vector<64x1xf32>
    %18 = arith.mulf %16, %17 : vector<64x1xf32>
    %cst_9 = arith.constant 0.000000e+00 : f32
    %19 = vector.broadcast %cst_9 : f32 to vector<64x1xf32>
    %20 = arith.maximumf %18, %19 : vector<64x1xf32>
    %cst_10 = arith.constant 9.99999997E-7 : f32
    %21 = vector.broadcast %cst_10 : f32 to vector<64x1xf32>
    %22 = arith.addf %20, %21 : vector<64x1xf32>
    %23 = math.rsqrt %22 : vector<64x1xf32>
    %24 = vector.broadcast %23 : vector<64x1xf32> to vector<64x128xf32>
    %25 = arith.mulf %9, %24 : vector<64x128xf32>
    %c0_11 = arith.constant 0 : index
    %c0_12 = arith.constant 0 : index
    %26 = vector.load %arg4[%c0_11, %c0_12] : memref<1x128xf32, #tpu.memory_space<vmem>>, vector<1x128xf32>
    %27 = vector.broadcast %26 : vector<1x128xf32> to vector<64x128xf32>
    %28 = arith.mulf %25, %27 : vector<64x128xf32>
    %c0_13 = arith.constant 0 : index
    %c0_14 = arith.constant 0 : index
    %29 = vector.load %arg5[%c0_13, %c0_14] : memref<1x128xf32, #tpu.memory_space<vmem>>, vector<1x128xf32>
    %30 = vector.broadcast %29 : vector<1x128xf32> to vector<64x128xf32>
    %31 = arith.addf %28, %30 : vector<64x128xf32>
    %c0_15 = arith.constant 0 : index
    %c0_16 = arith.constant 0 : index
    %c0_17 = arith.constant 0 : index
    %32 = vector.load %arg6[%c0_15, %c0_16, %c0_17] : memref<1x64x128xf32, #tpu.memory_space<vmem>>, vector<1x64x128xf32>
    %33 = vector.shape_cast %32 : vector<1x64x128xf32> to vector<64x128xf32>
    %34 = vector.shape_cast %31 : vector<64x128xf32> to vector<1x64x128xf32>
    tpu.vector_store %arg6[%c0_15, %c0_16, %c0_17], %34 {strides = array<i32>} : memref<1x64x128xf32, #tpu.memory_space<vmem>>, vector<1x64x128xf32>,
    return
  }
  func.func @transform_0(%arg0: i32, %arg1: i32) -> (i32, i32, i32) {
    %c0_i32 = arith.constant 0 : i32
    %c0_i32_0 = arith.constant 0 : i32
    return %arg0, %arg1, %c0_i32 : i32, i32, i32
  }
  func.func @transform_1(%arg0: i32, %arg1: i32) -> (i32, i32) {
    %c0_i32 = arith.constant 0 : i32
    %c0_i32_0 = arith.constant 0 : i32
    %c0_i32_1 = arith.constant 0 : i32
    return %c0_i32, %c0_i32_0 : i32, i32
  }
  func.func @transform_2(%arg0: i32, %arg1: i32) -> (i32, i32) {
    %c0_i32 = arith.constant 0 : i32
    %c0_i32_0 = arith.constant 0 : i32
    %c0_i32_1 = arith.constant 0 : i32
    return %c0_i32, %c0_i32_0 : i32, i32
  }
  func.func @transform_3(%arg0: i32, %arg1: i32) -> (i32, i32) {
    %c0_i32 = arith.constant 0 : i32
    %c0_i32_0 = arith.constant 0 : i32
    %c0_i32_1 = arith.constant 0 : i32
    return %c0_i32, %c0_i32_0 : i32, i32
  }
  func.func @transform_4(%arg0: i32, %arg1: i32) -> (i32, i32, i32) {
    %c0_i32 = arith.constant 0 : i32
    %c0_i32_0 = arith.constant 0 : i32
    return %arg0, %arg1, %c0_i32 : i32, i32, i32
  }
}

</mosaic_0001>

<llo_original>
// kernel: downsample_layer.1
$region0: #{downsample_layer.1}
  #allocation0 [shape = 'u32[]', space=smem, size = 0x4, offset = 0x4, fixed_abs, tag = 'smem constant byte address 0x4 - core index']
  #allocation1 [shape = 'u32[144,128]{1,0:T(1,128)}', space=vmem, size = 0x12000, scoped, tag = 'internal scratch']
  %s0 = inlined_call_operand.vmem [shape: bf16[2,64,36], index: 0, kind: input, shape index: {}]
  %s1 = inlined_call_operand.vmem [shape: bf16[36,128], index: 1, kind: input, shape index: {}]
  %s2 = inlined_call_operand.vmem [shape: f32[1,128], index: 2, kind: input, shape index: {}]
  %s3 = inlined_call_operand.vmem [shape: f32[1,128], index: 3, kind: input, shape index: {}]
  %s4 = inlined_call_operand.hbm [shape: f32[2,64,128], index: 4, kind: output, shape index: {}]
  %s5 = sld [smem:[#allocation0]]
  $region49: #{downsample_layer.1} parent=0
    _
  %s7 = ssub.s32 1, %s5
  %s8 = scalar_select 0, %s7, %s5
  $region1: #{downsample_layer.1} parent=0
    #allocation2 [shape = 'u8[65536]{0}', space=vmem, size = 0x10000, scoped, tag = 'output window, operand 0']
    #allocation3 [shape = 's32[2]{0}', space=sflag, size = 0x8, scoped, tag = 'scoped memory for downsample_layer.1']
    %9 = vsyncpa [#allocation3], 0
    %s10 = scalar_lea.sflag [#allocation3], 1
    %11 = vsyncpa %s10, 0
    loop: start=0, step=1, limit=4
    $region2: #{downsample_layer.1} parent=1 // loop_pre_header
      _
    $region3: #{downsample_layer.1} parent=1 // loop_header
      %s13 = sphi 0, %s17
      %p14 = scmp.ge.s32.totalorder %s13, 4
      %s20 = sphi 0, %s32
      %s21 = sphi 0, %s28
      %s22 = sphi 0, %s20
      %s23 = sphi 0, %s21
      %s24 = sphi 0, %s22
      %s25 = sphi 0, %s23
      %s37 = sphi 0, %s39
      %s40 = sphi 0, %s37
      %s41 = sphi 0, %s40
      %s57 = sphi 0, %s41
      %s61 = sphi 0, %s61
      %s63 = sphi 0, %s61
      %s64 = sphi 0, %s63
      %s78 = sphi 0, %s64
      %s82 = sphi 0, %s82
      %s84 = sphi 0, %s82
      %s85 = sphi 0, %s84
      %s99 = sphi 0, %s85
      %s103 = sphi 0, %s103
      %s105 = sphi 0, %s103
      %s106 = sphi 0, %s105
      %s120 = sphi 0, %s106
      %s128 = sphi 0, %s130
      %s131 = sphi 0, %s128
      %s132 = sphi 0, %s131
      %s148 = sphi 0, %s132
    $region4: #{downsample_layer.1} parent=1 // loop_header_branch
      %16 = sbr.rel (%p14) target = $region8
    $region5: #{downsample_layer.1} parent=1 // loop_body
      %s18 = ssub.s32 %s13, 1
      %s19 = ssub.s32 %s13, 2
      %s26 = sadd.s32 1, %s21
      %p27 = scmp.ge.s32.totalorder %s26, 1
      %s28 = scalar_select %p27, 0, %s26
      %s29 = sadd.s32 1, %s20
      %s30 = scalar_select %p27, %s29, %s20
      %p31 = scmp.ge.s32.totalorder %s30, 2
      %s32 = scalar_select %p31, 0, %s30
      %s33 = ssub.s32 %s20, %s32
      %s34 = ssub.s32 %s21, %s28
      %s35 = sor.u32 %s33, %s34
      %p36 = scmp.eq.s32.totalorder %s35, 0
      %s38 = sadd.s32 %s37, 1
      %s39 = scalar_select %p36, %s37, %s38
      %p42 = pneg %p36
      %p43 = scmp.eq.s32.totalorder %s13, 1
      %p44 = por %p42, %p43
      %p45 = scmp.ne.s32.totalorder %s37, %s40
      %p46 = scmp.eq.s32.totalorder %s13, 0
      %p47 = por %p45, %p46
      %p48 = scmp.ne.s32.totalorder %s37, %s40
      %p49 = scmp.eq.s32.totalorder %s18, 1
      %p50 = por %p48, %p49
      %p51 = scmp.ne.s32.totalorder %s40, %s41
      %p52 = scmp.eq.s32.totalorder %s18, 0
      %p53 = por %p51, %p52
      %p54 = scmp.ne.s32.totalorder %s40, %s41
      %p55 = scmp.eq.s32.totalorder %s19, 1
      %p56 = por %p54, %p55
      %p58 = scmp.ne.s32.totalorder %s41, %s57
      %p59 = scmp.eq.s32.totalorder %s19, 0
      %p60 = por %p58, %p59
      %s62 = sadd.s32 %s61, 1
      %p65 = scmp.eq.s32.totalorder %s13, 1
      %p66 = scmp.ne.s32.totalorder %s61, %s63
      %p67 = scmp.eq.s32.totalorder %s13, 0
      %p68 = por %p66, %p67
      %p69 = scmp.ne.s32.totalorder %s61, %s63
      %p70 = scmp.eq.s32.totalorder %s18, 1
      %p71 = por %p69, %p70
      %p72 = scmp.ne.s32.totalorder %s63, %s64
      %p73 = scmp.eq.s32.totalorder %s18, 0
      %p74 = por %p72, %p73
      %p75 = scmp.ne.s32.totalorder %s63, %s64
      %p76 = scmp.eq.s32.totalorder %s19, 1
      %p77 = por %p75, %p76
      %p79 = scmp.ne.s32.totalorder %s64, %s78
      %p80 = scmp.eq.s32.totalorder %s19, 0
      %p81 = por %p79, %p80
      %s83 = sadd.s32 %s82, 1
      %p86 = scmp.eq.s32.totalorder %s13, 1
      %p87 = scmp.ne.s32.totalorder %s82, %s84
      %p88 = scmp.eq.s32.totalorder %s13, 0
      %p89 = por %p87, %p88
      %p90 = scmp.ne.s32.totalorder %s82, %s84
      %p91 = scmp.eq.s32.totalorder %s18, 1
      %p92 = por %p90, %p91
      %p93 = scmp.ne.s32.totalorder %s84, %s85
      %p94 = scmp.eq.s32.totalorder %s18, 0
      %p95 = por %p93, %p94
      %p96 = scmp.ne.s32.totalorder %s84, %s85
      %p97 = scmp.eq.s32.totalorder %s19, 1
      %p98 = por %p96, %p97
      %p100 = scmp.ne.s32.totalorder %s85, %s99
      %p101 = scmp.eq.s32.totalorder %s19, 0
      %p102 = por %p100, %p101
      %s104 = sadd.s32 %s103, 1
      %p107 = scmp.eq.s32.totalorder %s13, 1
      %p108 = scmp.ne.s32.totalorder %s103, %s105
      %p109 = scmp.eq.s32.totalorder %s13, 0
      %p110 = por %p108, %p109
      %p111 = scmp.ne.s32.totalorder %s103, %s105
      %p112 = scmp.eq.s32.totalorder %s18, 1
      %p113 = por %p111, %p112
      %p114 = scmp.ne.s32.totalorder %s105, %s106
      %p115 = scmp.eq.s32.totalorder %s18, 0
      %p116 = por %p114, %p115
      %p117 = scmp.ne.s32.totalorder %s105, %s106
      %p118 = scmp.eq.s32.totalorder %s19, 1
      %p119 = por %p117, %p118
      %p121 = scmp.ne.s32.totalorder %s106, %s120
      %p122 = scmp.eq.s32.totalorder %s19, 0
      %p123 = por %p121, %p122
      %s124 = ssub.s32 %s20, %s32
      %s125 = ssub.s32 %s21, %s28
      %s126 = sor.u32 %s124, %s125
      %p127 = scmp.eq.s32.totalorder %s126, 0
      %s129 = sadd.s32 %s128, 1
      %s130 = scalar_select %p127, %s128, %s129
      %p133 = pneg %p127
      %p134 = scmp.eq.s32.totalorder %s13, 1
      %p135 = por %p133, %p134
      %p136 = scmp.ne.s32.totalorder %s128, %s131
      %p137 = scmp.eq.s32.totalorder %s13, 0
      %p138 = por %p136, %p137
      %p139 = scmp.ne.s32.totalorder %s128, %s131
      %p140 = scmp.eq.s32.totalorder %s18, 1
      %p141 = por %p139, %p140
      %p142 = scmp.ne.s32.totalorder %s131, %s132
      %p143 = scmp.eq.s32.totalorder %s18, 0
      %p144 = por %p142, %p143
      %p145 = scmp.ne.s32.totalorder %s131, %s132
      %p146 = scmp.eq.s32.totalorder %s19, 1
      %p147 = por %p145, %p146
      %p149 = scmp.ne.s32.totalorder %s132, %s148
      %p150 = scmp.eq.s32.totalorder %s19, 0
      %p151 = por %p149, %p150
      %p152 = scmp.le.s32.totalorder 1, %s13
      %p153 = scmp.lt.s32.totalorder %s13, 3
      %p154 = pnand %p152, %p153
      %p155 = pneg %p154
      // Predicated region
      $region9: #{downsample_layer.1} parent=5 // pred_check
        _
      $region10: #{downsample_layer.1} parent=5 // pred_check_branch
        %157 = sbr.rel (%p154) target = $region12
      $region11: #{downsample_layer.1} parent=5 // pred_region
        %s158 = ssub.s32 %s13, 1
        // Predicated region
        $region13: #{downsample_layer.1} parent=11 // pred_check
          %p159 = pneg %p74
        $region14: #{downsample_layer.1} parent=11 // pred_check_branch
          %161 = sbr.rel (%p159) target = $region16
        $region15: #{downsample_layer.1} parent=11 // pred_region
          _
        $region16: #{downsample_layer.1} parent=11 // pred_fallthru
          _
        // Predicated region
        $region17: #{downsample_layer.1} parent=11 // pred_check
          %p162 = pneg %p95
        $region18: #{downsample_layer.1} parent=11 // pred_check_branch
          %164 = sbr.rel (%p162) target = $region20
        $region19: #{downsample_layer.1} parent=11 // pred_region
          _
        $region20: #{downsample_layer.1} parent=11 // pred_fallthru
          _
        // Predicated region
        $region21: #{downsample_layer.1} parent=11 // pred_check
          %p165 = pneg %p116
        $region22: #{downsample_layer.1} parent=11 // pred_check_branch
          %167 = sbr.rel (%p165) target = $region24
        $region23: #{downsample_layer.1} parent=11 // pred_region
          _
        $region24: #{downsample_layer.1} parent=11 // pred_fallthru
          _
      $region12: #{downsample_layer.1} parent=5 // pred_fallthru
        _
      %p168 = scmp.lt.s32.totalorder %s13, 2
      // Predicated region
      $region25: #{downsample_layer.1} parent=5 // pred_check
        %p169 = pneg %p168
      $region26: #{downsample_layer.1} parent=5 // pred_check_branch
        %171 = sbr.rel (%p169) target = $region28
      $region27: #{downsample_layer.1} parent=5 // pred_region
        // Predicated region
        $region29: #{downsample_layer.1} parent=27 // pred_check
          %p172 = pneg %p47
        $region30: #{downsample_layer.1} parent=27 // pred_check_branch
          %174 = sbr.rel (%p172) target = $region32
        $region31: #{downsample_layer.1} parent=27 // pred_region
          %s175 = smul.u32 8, %s21
          %p176 = scmp.lt.s32.totalorder %s20, 1
          %s177 = scalar_select %p176, %s20, 1
          %p178 = scmp.lt.s32.totalorder %s175, 7
          %s179 = scalar_select %p178, %s175, 7
          %s180 = smul.addr %s177, 8
          %s181 = sadd.s32 %s179, %s180
          %s182 = smul.addr %s181, 4
          %s183 = scalar_lea.vmem %s0, %s182
          %s184 = smul.u32 8, %s21
        $region32: #{downsample_layer.1} parent=27 // pred_fallthru
          _
      $region28: #{downsample_layer.1} parent=5 // pred_fallthru
        _
      %p185 = scmp.le.s32.totalorder 1, %s13
      %p186 = scmp.lt.s32.totalorder %s13, 3
      %p187 = pnand %p185, %p186
      %p188 = pneg %p187
      // Predicated region
      $region33: #{downsample_layer.1} parent=5 // pred_check
        _
      $region34: #{downsample_layer.1} parent=5 // pred_check_branch
        %190 = sbr.rel (%p187) target = $region36
      $region35: #{downsample_layer.1} parent=5 // pred_region
        %s191 = ssub.s32 %s13, 1
        %s192 = smul.u32 8, %s23
        %p193 = scmp.lt.s32.totalorder %s22, 1
        %s194 = scalar_select %p193, %s22, 1
        %p195 = scmp.lt.s32.totalorder %s192, 7
        %s196 = scalar_select %p195, %s192, 7
        %s197 = smul.addr %s194, 8
        %s198 = sadd.s32 %s196, %s197
        %s199 = smul.addr %s198, 4
        %s200 = scalar_lea.vmem %s0, %s199
        %p201 = pneg %p53
        %p202 = pneg %p50
        %p203 = pneg %p74
        %p204 = pneg %p71
        %p205 = pneg %p95
        %p206 = pneg %p92
        %p207 = pneg %p116
        %p208 = pneg %p113
        %p209 = pneg %p144
        %p210 = pneg %p141
        %s211 = sand.u32 %s131, 1
        %s212 = scalar_lea.sflag [#allocation3], %s211
        %s213 = sand.u32 %s131, 1
        %s214 = smul.addr %s213, 64
        %s215 = scalar_lea.vmem [#allocation2], %s214
        %s216 = smul.u32 8, %s23
        %p217 = scmp.lt.s32.totalorder %s22, 1
        %s218 = scalar_select %p217, %s22, 1
        %p219 = scmp.lt.s32.totalorder %s216, 7
        %s220 = scalar_select %p219, %s216, 7
        %s221 = smul.addr %s218, 8
        %s222 = sadd.s32 %s220, %s221
        %s223 = smul.addr %s222, 4
        %s224 = scalar_lea.vmem %s0, %s223
        %s225 = smul.u32 8, %s23
        %s226 = smul.u32 8, %s23
        %v228 = vld [vmem:[%s224] sm:$0xf]
        %v229 = vld [vmem:[%s224 + $0x4] sm:$0xf]
        %v230 = vld [vmem:[%s224 + $0x8] sm:$0xf]
        %v231 = vld [vmem:[%s224 + $0xc] sm:$0xf]
        %v232 = vld [vmem:[%s224 + $0x10] sm:$0xf]
        %v233 = vld [vmem:[%s224 + $0x14] sm:$0xf]
        %v234 = vld [vmem:[%s224 + $0x18] sm:$0xf]
        %v235 = vld [vmem:[%s224 + $0x1c] sm:$0xf]
        %v236 = vld [vmem:[%s1] sm:$0xf]
        %v237 = vld [vmem:[%s1 + $0x4] sm:$0xf]
        %v238 = vld [vmem:[%s1 + $0x8] sm:$0xf]
        %v239 = vld [vmem:[%s1 + $0xc] sm:$0xf]
        %v240 = vld [vmem:[%s1 + $0x10] sm:$0x3]
        %v249 = vunpack.c.l.b16 %v228
        %v250 = vunpack.c.l.b16 %v229
        %v251 = vunpack.c.l.b16 %v230
        %v252 = vunpack.c.l.b16 %v231
        %v253 = vunpack.c.l.b16 %v232
        %v254 = vunpack.c.l.b16 %v233
        %v255 = vunpack.c.l.b16 %v234
        %v256 = vunpack.c.l.b16 %v235
        %v257 = vpack.c.b16 %v250, %v249
        %v258 = vpack.c.b16 %v252, %v251
        %v259 = vpack.c.b16 %v254, %v253
        %v260 = vpack.c.b16 %v256, %v255
        %v266 = vunpack.c.l.b16 %v236
        %v267 = vunpack.c.l.b16 %v237
        %v268 = vunpack.c.l.b16 %v238
        %v269 = vunpack.c.l.b16 %v239
        %v270 = vunpack.c.l.b16 %v240
        %v271 = vpack.c.b16 %v267, %v266
        %v272 = vpack.c.b16 %v269, %v268
        %v273 = vpack.c.b16 %v270, %v270
        %vm276 = vcmask 293888
        %v278 = vsel %vm276, %v257, 0
        %v281 = vsel %vm276, %v258, 0
        %v284 = vsel %vm276, %v259, 0
        %v287 = vsel %vm276, %v260, 0
        %vm289 = vcmask 1041408
        %v291 = vsel %vm289, %v273, 0
        %293 = vmatprep.subr.bf16.mxu0 0
        %294 = vmatpush1.bf16.msra.mxu0 0
        %295 = vmatprep.subr.bf16.mxu0 0
        %296 = vmatpush1.bf16.msra.mxu0 0
        %297 = vmatprep.subr.bf16.mxu0 0
        %298 = vmatpush1.bf16.msra.mxu0 0
        %299 = vmatprep.subr.bf16.mxu0 0
        %300 = vmatpush1.bf16.msra.mxu0 0
        %301 = vmatprep.subr.bf16.mxu0 0
        %302 = vmatpush1.bf16.msra.mxu0 0
        %303 = vmatprep.subr.bf16.mxu0 0
        %304 = vmatpush1.bf16.msra.mxu0 %v291
        %305 = vmatprep.subr.bf16.mxu0 0
        %306 = vmatpush1.bf16.msra.mxu0 %v272
        %307 = vmatprep.subr.bf16.mxu0 0
        %308 = vmatpush1.bf16.msra.mxu0 %v271
        %309 = vmatprep.subr.bf16.mxu0 0
        %310 = vmatpush2.bf16.msra.mxu0 0
        %311 = vmatprep.subr.bf16.mxu0 0
        %312 = vmatpush2.bf16.msra.mxu0 0
        %313 = vmatprep.subr.bf16.mxu0 0
        %314 = vmatpush2.bf16.msra.mxu0 0
        %315 = vmatprep.subr.bf16.mxu0 0
        %316 = vmatpush2.bf16.msra.mxu0 0
        %317 = vmatprep.subr.bf16.mxu0 0
        %318 = vmatpush2.bf16.msra.mxu0 0
        %319 = vmatprep.subr.bf16.mxu0 0
        %320 = vmatpush2.bf16.msra.mxu0 0
        %321 = vmatprep.subr.bf16.mxu0 0
        %322 = vmatpush2.bf16.msra.mxu0 0
        %323 = vmatprep.subr.bf16.mxu0 0
        %324 = vmatpush2.bf16.msra.mxu0 0
        %325 = vmatprep.mubr.bf16.mxu0 0
        %326 = vmatmul.mubr.bf16.gmra.mxu0 %v278
        %v327 = vpop.f32.mrf.mxu0
        %v328 = vadd.f32 0.0, %v327
        %v329 = vpop.f32.mrf.mxu0
        %v330 = vpop.f32.mrf.mxu0
        %v331 = vadd.f32 0.0, %v330
        %v332 = vpop.f32.mrf.mxu0
        %333 = vmatprep.mubr.bf16.mxu0 0
        %334 = vmatmul.mubr.bf16.gmra.mxu0 %v281
        %v335 = vpop.f32.mrf.mxu0
        %v336 = vadd.f32 0.0, %v335
        %v337 = vpop.f32.mrf.mxu0
        %v338 = vpop.f32.mrf.mxu0
        %v339 = vadd.f32 0.0, %v338
        %v340 = vpop.f32.mrf.mxu0
        %341 = vmatprep.mubr.bf16.mxu0 0
        %342 = vmatmul.mubr.bf16.gmra.mxu0 %v284
        %v343 = vpop.f32.mrf.mxu0
        %v344 = vadd.f32 0.0, %v343
        %v345 = vpop.f32.mrf.mxu0
        %v346 = vpop.f32.mrf.mxu0
        %v347 = vadd.f32 0.0, %v346
        %v348 = vpop.f32.mrf.mxu0
        %349 = vmatprep.mubr.bf16.mxu0 0
        %350 = vmatmul.mubr.bf16.gmra.mxu0 %v287
        %v351 = vpop.f32.mrf.mxu0
        %v352 = vadd.f32 0.0, %v351
        %v353 = vpop.f32.mrf.mxu0
        %v354 = vpop.f32.mrf.mxu0
        %v355 = vadd.f32 0.0, %v354
        %v356 = vpop.f32.mrf.mxu0
        %357 = vdwg.mxu0
        %358 = vadd.xlane.f32.xlu0 %v328
        %v359 = vpop.xlane.xlu0 %358
        %360 = vadd.xlane.f32.xlu0 %v331
        %v361 = vpop.xlane.xlu0 %360
        %362 = vadd.xlane.f32.xlu0 %v336
        %v363 = vpop.xlane.xlu0 %362
        %364 = vadd.xlane.f32.xlu0 %v339
        %v365 = vpop.xlane.xlu0 %364
        %366 = vadd.xlane.f32.xlu0 %v344
        %v367 = vpop.xlane.xlu0 %366
        %368 = vadd.xlane.f32.xlu0 %v347
        %v369 = vpop.xlane.xlu0 %368
        %370 = vadd.xlane.f32.xlu0 %v352
        %v371 = vpop.xlane.xlu0 %370
        %372 = vadd.xlane.f32.xlu0 %v355
        %v373 = vpop.xlane.xlu0 %372
        %v374 = vmul.f32 %v359, 0.125
        %v375 = vmul.f32 %v361, 0.125
        %v376 = vmul.f32 %v363, 0.125
        %v377 = vmul.f32 %v365, 0.125
        %v378 = vmul.f32 %v367, 0.125
        %v379 = vmul.f32 %v369, 0.125
        %v380 = vmul.f32 %v371, 0.125
        %v381 = vmul.f32 %v373, 0.125
        %v382 = vsub.f32 %v328, %v374
        %v383 = vsub.f32 %v331, %v375
        %v384 = vsub.f32 %v336, %v376
        %v385 = vsub.f32 %v339, %v377
        %v386 = vsub.f32 %v344, %v378
        %v387 = vsub.f32 %v347, %v379
        %v388 = vsub.f32 %v352, %v380
        %v389 = vsub.f32 %v355, %v381
        %v390 = vmul.f32 %v382, %v382
        %v391 = vmul.f32 %v383, %v383
        %v392 = vmul.f32 %v384, %v384
        %v393 = vmul.f32 %v385, %v385
        %v394 = vmul.f32 %v386, %v386
        %v395 = vmul.f32 %v387, %v387
        %v396 = vmul.f32 %v388, %v388
        %v397 = vmul.f32 %v389, %v389
        %398 = vadd.xlane.f32.xlu0 %v390
        %v399 = vpop.xlane.xlu0 %398
        %400 = vadd.xlane.f32.xlu0 %v391
        %v401 = vpop.xlane.xlu0 %400
        %402 = vadd.xlane.f32.xlu0 %v392
        %v403 = vpop.xlane.xlu0 %402
        %404 = vadd.xlane.f32.xlu0 %v393
        %v405 = vpop.xlane.xlu0 %404
        %406 = vadd.xlane.f32.xlu0 %v394
        %v407 = vpop.xlane.xlu0 %406
        %408 = vadd.xlane.f32.xlu0 %v395
        %v409 = vpop.xlane.xlu0 %408
        %410 = vadd.xlane.f32.xlu0 %v396
        %v411 = vpop.xlane.xlu0 %410
        %412 = vadd.xlane.f32.xlu0 %v397
        %v413 = vpop.xlane.xlu0 %412
        %v414 = vmul.f32 %v374, %v374
        %v415 = vmul.f32 %v375, %v375
        %v416 = vmul.f32 %v376, %v376
        %v417 = vmul.f32 %v377, %v377
        %v418 = vmul.f32 %v378, %v378
        %v419 = vmul.f32 %v379, %v379
        %v420 = vmul.f32 %v380, %v380
        %v421 = vmul.f32 %v381, %v381
        %v422 = vmul.f32 %v414, 120.0
        %v423 = vmul.f32 %v415, 120.0
        %v424 = vmul.f32 %v416, 120.0
        %v425 = vmul.f32 %v417, 120.0
        %v426 = vmul.f32 %v418, 120.0
        %v427 = vmul.f32 %v419, 120.0
        %v428 = vmul.f32 %v420, 120.0
        %v429 = vmul.f32 %v421, 120.0
        %v430 = vsub.f32 %v399, %v422
        %v431 = vsub.f32 %v401, %v423
        %v432 = vsub.f32 %v403, %v424
        %v433 = vsub.f32 %v405, %v425
        %v434 = vsub.f32 %v407, %v426
        %v435 = vsub.f32 %v409, %v427
        %v436 = vsub.f32 %v411, %v428
        %v437 = vsub.f32 %v413, %v429
        %v438 = vmul.f32 %v430, 0.125
        %v439 = vmul.f32 %v431, 0.125
        %v440 = vmul.f32 %v432, 0.125
        %v441 = vmul.f32 %v433, 0.125
        %v442 = vmul.f32 %v434, 0.125
        %v443 = vmul.f32 %v435, 0.125
        %v444 = vmul.f32 %v436, 0.125
        %v445 = vmul.f32 %v437, 0.125
        %v446 = vmax.f32 %v438, 0.0
        %v447 = vmax.f32 %v439, 0.0
        %v448 = vmax.f32 %v440, 0.0
        %v449 = vmax.f32 %v441, 0.0
        %v450 = vmax.f32 %v442, 0.0
        %v451 = vmax.f32 %v443, 0.0
        %v452 = vmax.f32 %v444, 0.0
        %v453 = vmax.f32 %v445, 0.0
        %v454 = vadd.f32 %v446, 1e-06
        %v455 = vadd.f32 %v447, 1e-06
        %v456 = vadd.f32 %v448, 1e-06
        %v457 = vadd.f32 %v449, 1e-06
        %v458 = vadd.f32 %v450, 1e-06
        %v459 = vadd.f32 %v451, 1e-06
        %v460 = vadd.f32 %v452, 1e-06
        %v461 = vadd.f32 %v453, 1e-06
        %v462 = vrsqrt.pop %v454
        %v463 = vrsqrt.pop %v455
        %v464 = vrsqrt.pop %v456
        %v465 = vrsqrt.pop %v457
        %v466 = vrsqrt.pop %v458
        %v467 = vrsqrt.pop %v459
        %v468 = vrsqrt.pop %v460
        %v469 = vrsqrt.pop %v461
        %v470 = vmul.f32 %v382, %v462
        %v471 = vmul.f32 %v383, %v463
        %v472 = vmul.f32 %v384, %v464
        %v473 = vmul.f32 %v385, %v465
        %v474 = vmul.f32 %v386, %v466
        %v475 = vmul.f32 %v387, %v467
        %v476 = vmul.f32 %v388, %v468
        %v477 = vmul.f32 %v389, %v469
        %v478 = vld [vmem:[%s2] sm:$0x1]
        %v480 = vlaneseq
        %v481 = vshrl.u32 %v480, 7
        %v482 = vsub.s32 0, %v481
        %v483 = vrot.slane %v478, %v482
        %v485 = vmul.f32 %v470, %v483
        %v486 = vmul.f32 %v471, %v483
        %v487 = vmul.f32 %v472, %v483
        %v488 = vmul.f32 %v473, %v483
        %v489 = vmul.f32 %v474, %v483
        %v490 = vmul.f32 %v475, %v483
        %v491 = vmul.f32 %v476, %v483
        %v492 = vmul.f32 %v477, %v483
        %v493 = vld [vmem:[%s3] sm:$0x1]
        %v495 = vlaneseq
        %v496 = vshrl.u32 %v495, 7
        %v497 = vsub.s32 0, %v496
        %v498 = vrot.slane %v493, %v497
        %v500 = vadd.f32 %v485, %v498
        %v501 = vadd.f32 %v486, %v498
        %v502 = vadd.f32 %v487, %v498
        %v503 = vadd.f32 %v488, %v498
        %v504 = vadd.f32 %v489, %v498
        %v505 = vadd.f32 %v490, %v498
        %v506 = vadd.f32 %v491, %v498
        %v507 = vadd.f32 %v492, %v498
        %508 = vst [vmem:[%s215] sm:$0xff] %v500
        %509 = vst [vmem:[%s215 + $0x8] sm:$0xff] %v501
        %510 = vst [vmem:[%s215 + $0x10] sm:$0xff] %v502
        %511 = vst [vmem:[%s215 + $0x18] sm:$0xff] %v503
        %512 = vst [vmem:[%s215 + $0x20] sm:$0xff] %v504
        %513 = vst [vmem:[%s215 + $0x28] sm:$0xff] %v505
        %514 = vst [vmem:[%s215 + $0x30] sm:$0xff] %v506
        %515 = vst [vmem:[%s215 + $0x38] sm:$0xff] %v507
        %s516 = sand.u32 %s131, 1
        %s517 = scalar_lea.sflag [#allocation3], %s516
        %s518 = sand.u32 %s131, 1
        %s519 = smul.addr %s518, 64
        %s520 = scalar_lea.vmem [#allocation2], %s519
        // Predicated region
        $region37: #{downsample_layer.1} parent=35 // pred_check
          %p521 = pneg %p141
        $region38: #{downsample_layer.1} parent=35 // pred_check_branch
          %523 = sbr.rel (%p521) target = $region40
        $region39: #{downsample_layer.1} parent=35 // pred_region
          %s524 = smul.u32 8, %s23
          %s526 = ssub.s32 1024, 1024
          %527 = vsyncadd %s517, %s526
          %s528 = smul.addr %s22, 8
          %s529 = sadd.s32 %s524, %s528
          %s530 = smul.addr %s529, 128
          %s531 = scalar_lea.hbm %s4, %s530
          %s532 = sshll.u32 %s520, 4
          %s533 = int_to_ptr.vmem [resolvable:$true] %s532
          %538 = dma.vmem_to_hbm [thread:$0]  %s533, 1024, %s531, %s517, 128, 128, 8
        $region40: #{downsample_layer.1} parent=35 // pred_fallthru
          _
      $region36: #{downsample_layer.1} parent=5 // pred_fallthru
        _
      %p539 = scmp.le.s32.totalorder 2, %s13
      // Predicated region
      $region41: #{downsample_layer.1} parent=5 // pred_check
        %p540 = pneg %p539
      $region42: #{downsample_layer.1} parent=5 // pred_check_branch
        %542 = sbr.rel (%p540) target = $region44
      $region43: #{downsample_layer.1} parent=5 // pred_region
        %s543 = ssub.s32 %s13, 2
        // Predicated region
        $region45: #{downsample_layer.1} parent=43 // pred_check
          %p544 = pneg %p147
        $region46: #{downsample_layer.1} parent=43 // pred_check_branch
          %546 = sbr.rel (%p544) target = $region48
        $region47: #{downsample_layer.1} parent=43 // pred_region
          %s547 = sand.u32 %s132, 1
          %s548 = scalar_lea.sflag [#allocation3], %s547
          %s549 = sand.u32 %s132, 1
          %s550 = smul.addr %s549, 64
          %s551 = scalar_lea.vmem [#allocation2], %s550
          %552 = dma.done %s548, 1024
        $region48: #{downsample_layer.1} parent=43 // pred_fallthru
          _
      $region44: #{downsample_layer.1} parent=5 // pred_fallthru
        _
    $region6: #{downsample_layer.1} parent=1 // loop_footer
      %s17 = sadd.s32 1, %s13
    $region7: #{downsample_layer.1} parent=1 // loop_footer_branch
      %12 = sbr.rel target = $region3
    $region8: #{downsample_layer.1} parent=1 // loop_exit
      _
    %553 = vsyncpa [#allocation3], 1
    %s554 = scalar_lea.sflag [#allocation3], 1
    %555 = vsyncpa %s554, 1

</llo_original>
